<compile_context>
chip_gen: v5e
topology: v5e:2x2
jax: 0.10.0
libtpu: 0.0.40
codegen_flags: <defaults>
</compile_context>

<pallas_src>
import jax
import jax.numpy as jnp
from jax.experimental import pallas as pl
from jax.experimental.pallas import tpu as pltpu


def _linear_kernel(x_ref, w_ref, b_ref, o_ref):
    """y[0, b] = sum_d x[b, d] * w[0, d] + bias.

    x_ref: (TB, D_in) VMEM  -- batch rows on sublanes, features lane-dense,
                               native dtype (f32 or bf16)
    w_ref: (1,  D_in) VMEM  -- natural PyTorch layout (same dtype as x)
    b_ref: (1,)       SMEM  -- f32 scalar bias, rides the scalar slot
    o_ref: (1,  TB)   VMEM  -- batch on the lane axis -> unmasked full-lane stores
    """
    acc = jax.lax.dot_general(
        w_ref[...],
        x_ref[...],
        dimension_numbers=(((1,), (1,)), ((), ())),  # contract the feature axis
        preferred_element_type=jnp.float32,          # f32 accumulation on MXU
    )  # -> (1, TB), lane-dense
    o_ref[...] = (acc + b_ref[0]).astype(o_ref.dtype)


def _round_up(v, m):
    return ((v + m - 1) // m) * m


def _default_block_b():
    # Generation-aware default: v7x (3.2 TB/s HBM, 2 TCs) wants >= 4 MiB of x
    # per grid step; v5e/v6e are well amortized at 8192 rows (2 MiB/step).
    try:
        kind = jax.devices()[0].device_kind.lower()
    except Exception:
        return 8192
    if "v7" in kind:
        return 16384
    return 8192


def _pick_block_b(B, block_b):
    """Rebalance the block so the grid has evenly sized blocks (>=2 of them)."""
    nblocks = -(-B // block_b)                       # ceil div
    balanced = _round_up(-(-B // nblocks), 512)      # even split, 512-row aligned
    return max(512, min(block_b, balanced))


def classifier_forward(x, weight, bias, *, block_b=None):
    """FADA Classifier forward: y = x @ W^T + b.

    x: (B, D_in); weight: (1, D_in) (PyTorch Linear layout); bias: (1,).
    Returns y: (B, 1) in x's dtype (f32 fallback for non-f32/bf16 inputs).
    """
    B, D_in = x.shape
    if block_b is None:
        block_b = _default_block_b()

    # Stream x in its native dtype; only the tiny weight/bias get cast.
    if x.dtype == jnp.bfloat16:
        w = weight.astype(jnp.bfloat16)              # bf16 x bf16 MXU dot, f32 acc
    else:
        if x.dtype != jnp.float32:
            x = x.astype(jnp.float32)                # fallback for exotic dtypes
        w = weight.astype(jnp.float32)
    out_dtype = x.dtype
    b = bias.astype(jnp.float32).reshape((1,))

    cost = pl.CostEstimate(
        flops=2 * B * D_in,
        transcendentals=0,
        bytes_accessed=(x.size * x.dtype.itemsize
                        + w.size * w.dtype.itemsize
                        + B * jnp.dtype(out_dtype).itemsize + 4),
    )
    cparams_common = dict(vmem_limit_bytes=32 * 1024 * 1024)

    if B <= block_b:
        # Small-batch path: whole problem lives in VMEM, no grid -> no per-step
        # pipeline overhead. (For truly tiny B a fused XLA jnp.dot would avoid
        # the custom-call boundary entirely; kept as Pallas per task spec.)
        y_row = pl.pallas_call(
            _linear_kernel,
            out_shape=jax.ShapeDtypeStruct((1, B), out_dtype),
            in_specs=[
                pl.BlockSpec(memory_space=pltpu.MemorySpace.VMEM),   # x (B, D_in)
                pl.BlockSpec(memory_space=pltpu.MemorySpace.VMEM),   # W (1, D_in)
                pl.BlockSpec(memory_space=pltpu.MemorySpace.SMEM),   # bias scalar
            ],
            out_specs=pl.BlockSpec(memory_space=pltpu.MemorySpace.VMEM),
            compiler_params=pltpu.CompilerParams(**cparams_common),
            cost_estimate=cost,
        )(x, w, b)
    else:
        # Large-batch path: mem-bound matvec; big, balanced row blocks on a
        # "parallel" grid axis (sharded across TensorCores on v7x).
        tb = _pick_block_b(B, block_b)
        grid = (pl.cdiv(B, tb),)
        y_row = pl.pallas_call(
            _linear_kernel,
            out_shape=jax.ShapeDtypeStruct((1, B), out_dtype),
            grid=grid,
            in_specs=[
                pl.BlockSpec((tb, D_in), lambda i: (i, 0)),          # x tile
                pl.BlockSpec((1, D_in), lambda i: (0, 0)),           # W (resident)
                pl.BlockSpec(memory_space=pltpu.MemorySpace.SMEM),   # bias scalar
            ],
            out_specs=pl.BlockSpec((1, tb), lambda i: (0, i)),       # lane-dense
            compiler_params=pltpu.CompilerParams(
                dimension_semantics=("parallel",),
                **cparams_common,
            ),
            cost_estimate=cost,
        )(x, w, b)

    # (1, B) -> (B, 1): contiguous reshape, free layout plumbing outside the kernel.
    return y_row.reshape(B, 1)


if __name__ == "__main__":
    D_in = 64

    key = jax.random.PRNGKey(0)
    kx, kw, kb, kx2, kx3 = jax.random.split(key, 5)

    # Deterministic synthetic parameters (PyTorch Linear shapes: W (1, D_in), b (1,))
    weight = jax.random.normal(kw, (1, D_in), dtype=jnp.float32) * 0.1
    bias = jax.random.normal(kb, (1,), dtype=jnp.float32) * 0.1

    # 1) Small batch (typical Classifier use): gridless path.
    B = 8
    x = jax.random.normal(kx, (B, D_in), dtype=jnp.float32)
    y = jax.block_until_ready(classifier_forward(x, weight, bias))
    y_ref = x @ weight.T + bias
    assert y.shape == (B, 1)
    assert jnp.allclose(y, y_ref, atol=1e-4, rtol=1e-4), "small-batch mismatch"

    # 2) Large batch, multiple of block: tiled "parallel"-grid path, big blocks.
    B2 = 32768
    x2 = jax.random.normal(kx2, (B2, D_in), dtype=jnp.float32)
    y2 = jax.block_until_ready(classifier_forward(x2, weight, bias, block_b=8192))
    y2_ref = x2 @ weight.T + bias
    assert y2.shape == (B2, 1)
    assert jnp.allclose(y2, y2_ref, atol=1e-4, rtol=1e-4), "large-batch mismatch"

    # 3) Ragged last tile (B % block_b != 0): verifies masked partial writeback.
    B3 = 12000
    x3 = jax.random.normal(kx3, (B3, D_in), dtype=jnp.float32)
    y3 = jax.block_until_ready(classifier_forward(x3, weight, bias, block_b=4096))
    y3_ref = x3 @ weight.T + bias
    assert y3.shape == (B3, 1)
    assert jnp.allclose(y3, y3_ref, atol=1e-4, rtol=1e-4), "ragged-batch mismatch"

    # 4) bf16 input streamed natively (no wrapper upcast -> half the HBM bytes).
    x4 = x2.astype(jnp.bfloat16)
    y4 = jax.block_until_ready(classifier_forward(x4, weight, bias, block_b=8192))
    y4_ref = (x4.astype(jnp.float32) @ weight.T + bias).astype(jnp.bfloat16)
    assert y4.dtype == jnp.bfloat16 and y4.shape == (B2, 1)
    assert jnp.allclose(y4.astype(jnp.float32), y4_ref.astype(jnp.float32),
                        atol=5e-2, rtol=5e-2), "bf16 mismatch"

    print("KERNEL_OK")
</pallas_src>

<mosaic_0001>
module attributes {stable_mosaic.version = 11 : i64} {
  func.func @_linear_kernel(%arg0: memref<8x64xf32, #tpu.memory_space<vmem>>, %arg1: memref<1x64xf32, #tpu.memory_space<vmem>>, %arg2: memref<1xf32, #tpu.memory_space<smem>>, %arg3: memref<1x8xf32, #tpu.memory_space<vmem>>) attributes {dimension_semantics = [], scalar_prefetch = 0 : i64, scratch_operands = 0 : i64, tpu.core_type = #tpu.core_type<tc>} {
    %c0 = arith.constant 0 : index
    %c0_0 = arith.constant 0 : index
    %0 = vector.load %arg1[%c0, %c0_0] : memref<1x64xf32, #tpu.memory_space<vmem>>, vector<1x64xf32>
    %c0_1 = arith.constant 0 : index
    %c0_2 = arith.constant 0 : index
    %1 = vector.load %arg0[%c0_1, %c0_2] : memref<8x64xf32, #tpu.memory_space<vmem>>, vector<8x64xf32>
    %cst = arith.constant dense<0.000000e+00> : vector<1x8xf32>
    %2 = tpu.matmul %0, %1, %cst {dimension_numbers = #tpu.dot_dimension_numbers<[1], [1], [0], [0], [0, 0, 1, 0], [], []>} : vector<1x64xf32>, vector<8x64xf32>, vector<1x8xf32> -> vector<1x8xf32>
    %c0_3 = arith.constant 0 : index
    %3 = memref.load %arg2[%c0_3] : memref<1xf32, #tpu.memory_space<smem>>
    %4 = vector.broadcast %3 : f32 to vector<1x8xf32>
    %5 = arith.addf %2, %4 : vector<1x8xf32>
    %c0_4 = arith.constant 0 : index
    %c0_5 = arith.constant 0 : index
    %6 = vector.load %arg3[%c0_4, %c0_5] : memref<1x8xf32, #tpu.memory_space<vmem>>, vector<1x8xf32>
    tpu.vector_store %arg3[%c0_4, %c0_5], %5 {strides = array<i32>} : memref<1x8xf32, #tpu.memory_space<vmem>>, vector<1x8xf32>,
    return
  }
}

</mosaic_0001>

<llo_original>
// kernel: tpu_custom_call.1
$region0: #{tpu_custom_call.1}
  #allocation0 [shape = 'u32[]', space=smem, size = 0x4, offset = 0x4, fixed_abs, tag = 'smem constant byte address 0x4 - core index']
  #allocation1 [shape = 'u32[72,128]{1,0:T(1,128)}', space=vmem, size = 0x9000, scoped, tag = 'internal scratch']
  #allocation2 [shape = 'f32[1]{0:T(128)S(6)}', space=smem, size = 0x200, scoped, tag = 'scoped memory for tpu_custom_call.1']
  %s0 = inlined_call_operand.hbm [shape: f32[8,64], index: 0, kind: input, shape index: {}]
  %s1 = inlined_call_operand.vmem [shape: f32[1,64], index: 1, kind: input, shape index: {}]
  %s2 = inlined_call_operand.<no memory space> [shape: f32[1], index: 2, kind: input, shape index: {}]
  %s3 = inlined_call_operand.hbm [shape: f32[1,8], index: 3, kind: output, shape index: {}]
  %s4 = sld [smem:[#allocation0]]
  $region26: #{tpu_custom_call.1} parent=0
    _
  %s6 = ssub.s32 1, %s4
  %s7 = scalar_select 0, %s6, %s4
  %8 = sst [smem:[#allocation2]] %s2
  $region1: #{tpu_custom_call.1} parent=0
    #allocation3 [shape = 'u8[4096]{0}', space=vmem, size = 0x1000, scoped, tag = 'input window, operand 0, single buffered']
    #allocation4 [shape = 's32[1]{0}', space=sflag, size = 0x4, scoped, tag = 'scoped memory for tpu_custom_call.1']
    #allocation5 [shape = 's32[1]{0}', space=sflag, size = 0x4, scoped, tag = 'scoped memory for tpu_custom_call.1']
    #allocation6 [shape = 'u8[512]{0}', space=vmem, size = 0x400, scoped, tag = 'output window, operand 0, single buffered']
    %9 = vsyncpa [#allocation4], 0
    %10 = vsyncpa [#allocation5], 0
    // Predicated region
    $region2: #{tpu_custom_call.1} parent=1 // pred_check
      _
    $region3: #{tpu_custom_call.1} parent=1 // pred_check_branch
      %12 = sbr.rel (0) target = $region5
    $region4: #{tpu_custom_call.1} parent=1 // pred_region
      %14 = vsyncadd [#allocation4], 0
      %s16 = sshll.u32 %s0, 4
      %s17 = int_to_ptr.hbm [resolvable:$true] %s16
      %s18 = sshll.u32 [#allocation3], 4
      %s19 = int_to_ptr.vmem [resolvable:$true] %s18
      %21 = dma.hbm_to_vmem [thread:$0]  %s17, 128, %s19, [#allocation4]
    $region5: #{tpu_custom_call.1} parent=1 // pred_fallthru
      _
    // Predicated region
    $region6: #{tpu_custom_call.1} parent=1 // pred_check
      _
    $region7: #{tpu_custom_call.1} parent=1 // pred_check_branch
      %23 = sbr.rel (0) target = $region9
    $region8: #{tpu_custom_call.1} parent=1 // pred_region
      _
    $region9: #{tpu_custom_call.1} parent=1 // pred_fallthru
      _
    // Predicated region
    $region10: #{tpu_custom_call.1} parent=1 // pred_check
      _
    $region11: #{tpu_custom_call.1} parent=1 // pred_check_branch
      %25 = sbr.rel (0) target = $region13
    $region12: #{tpu_custom_call.1} parent=1 // pred_region
      _
    $region13: #{tpu_custom_call.1} parent=1 // pred_fallthru
      _
    // Predicated region
    $region14: #{tpu_custom_call.1} parent=1 // pred_check
      _
    $region15: #{tpu_custom_call.1} parent=1 // pred_check_branch
      %27 = sbr.rel (0) target = $region17
    $region16: #{tpu_custom_call.1} parent=1 // pred_region
      %29 = dma.done [#allocation4], 128
    $region17: #{tpu_custom_call.1} parent=1 // pred_fallthru
      _
    %v30 = vld [vmem:[%s1] sm:$0x1]
    %v31 = vld [vmem:[#allocation3] sm:$0xff]
    %s32 = sld [smem:[#allocation2]]
    %v33 = vstv %s32
    %vm34 = vcmask 523264
    %v36 = vsel %vm34, %v30, 0
    %v39 = vsel %vm34, %v31, 0
    %41 = vmatpush.xpose.msra.mxu0 0.0
    %42 = vmatpush.xpose.msra.mxu0 0.0
    %43 = vmatpush.xpose.msra.mxu0 0.0
    %44 = vmatpush.xpose.msra.mxu0 0.0
    %45 = vmatpush.xpose.msra.mxu0 0.0
    %46 = vmatpush.xpose.msra.mxu0 0.0
    %47 = vmatpush.xpose.msra.mxu0 0.0
    %48 = vmatpush.xpose.msra.mxu0 0.0
    %49 = vmatpush.xpose.msra.mxu0 0.0
    %50 = vmatpush.xpose.msra.mxu0 0.0
    %51 = vmatpush.xpose.msra.mxu0 0.0
    %52 = vmatpush.xpose.msra.mxu0 0.0
    %53 = vmatpush.xpose.msra.mxu0 0.0
    %54 = vmatpush.xpose.msra.mxu0 0.0
    %55 = vmatpush.xpose.msra.mxu0 0.0
    %56 = vmatpush.xpose.msra.mxu0 %v39
    %57 = vmatmul.f32.gmra.mxu0 %v36
    %v58 = vpop.f32.mrf.mxu0
    %v59 = vadd.f32 %v33, %v58
    %60 = vdwg.mxu0
    %vm61 = vcmask 57344
    %62 = vst.msk [vmem:[#allocation6] sm:$0x1] %vm61, %v59
    // Predicated region
    $region18: #{tpu_custom_call.1} parent=1 // pred_check
      _
    $region19: #{tpu_custom_call.1} parent=1 // pred_check_branch
      %64 = sbr.rel (0) target = $region21
    $region20: #{tpu_custom_call.1} parent=1 // pred_region
      %66 = vsyncadd [#allocation5], 0
      %s68 = sshll.u32 [#allocation6], 4
      %s69 = int_to_ptr.vmem [resolvable:$true] %s68
      %s70 = sshll.u32 %s3, 4
      %s71 = int_to_ptr.hbm [resolvable:$true] %s70
      %73 = dma.vmem_to_hbm [thread:$0]  %s69, 16, %s71, [#allocation5]
    $region21: #{tpu_custom_call.1} parent=1 // pred_fallthru
      _
    // Predicated region
    $region22: #{tpu_custom_call.1} parent=1 // pred_check
      _
    $region23: #{tpu_custom_call.1} parent=1 // pred_check_branch
      %75 = sbr.rel (0) target = $region25
    $region24: #{tpu_custom_call.1} parent=1 // pred_region
      %77 = dma.done [#allocation5], 16
    $region25: #{tpu_custom_call.1} parent=1 // pred_fallthru
      _
    %78 = vsyncpa [#allocation4], 1
    %79 = vsyncpa [#allocation5], 1

</llo_original>
